<compile_context>
chip_gen: v5e
topology: v5e:2x2
jax: 0.10.0
libtpu: 0.0.40
codegen_flags: <defaults>
</compile_context>

<pallas_src>
import functools
import math

import jax
import jax.numpy as jnp
from jax import lax
from jax.experimental import pallas as pl
from jax.experimental.pallas import tpu as pltpu

C_SOL = 299792458.0


def _round_up(x, m):
    return ((x + m - 1) // m) * m


def _pick_tiling(dim, target):
    """Pick (tile, padded_dim): tile is a multiple of 128 dividing padded_dim,
    minimizing padding, tile <= target, and when the dim allows it the axis
    keeps >= 2 blocks (v7x megacore parallel axis)."""
    pad_min = _round_up(dim, 128)
    cap = min(target, pad_min)
    if pad_min >= 256:                       # leave >= 2 blocks on this axis
        cap = min(cap, pad_min // 2)
    cap = max(128, (cap // 128) * 128)
    best_tile, best_pad = 128, _round_up(dim, 128)
    for tile in range(128, cap + 1, 128):
        padded = _round_up(dim, tile)
        if (padded, -tile) < (best_pad, -best_tile):
            best_tile, best_pad = tile, padded
    return best_tile, best_pad


# ----------------------------------------------------------------------------
# Pallas kernel.
#   x_stack : (2B, Kdim_pad) bf16, rows [0:B]=real, [B:2B]=imag of the small
#             operand (scene for forward, measurement for adjoint).
#   A       : (2, KTR_pad, V_pad) bf16, [0]=real, [1]=imag.
# Forward  (adjoint=False): contract V  -> P,Q of shape (2B, KTR_pad)
# Adjoint  (adjoint=True) : contract KTR-> P,Q of shape (2B, V_pad)
# P = x_stack . A_re,  Q = x_stack . A_im; complex recombination (incl. the
# conjugate's sign flips) is done on the tiny results in the wrapper.
# ----------------------------------------------------------------------------
def _mv_kernel(x_ref, a_ref, p_ref, q_ref, *, adjoint):
    @pl.when(pl.program_id(1) == 0)
    def _():
        p_ref[...] = jnp.zeros_like(p_ref)
        q_ref[...] = jnp.zeros_like(q_ref)

    x = x_ref[...]                     # (2B, tk) bf16
    a_re = a_ref[0]                    # forward: (tn, tk); adjoint: (tk, tn)
    a_im = a_ref[1]

    if adjoint:
        dn = (((1,), (0,)), ((), ()))  # plain matmul: contract KTR
    else:
        dn = (((1,), (1,)), ((), ()))  # contract last dims (A stored (KTR, V))

    p_ref[...] += lax.dot_general(x, a_re, dn, preferred_element_type=jnp.float32)
    q_ref[...] += lax.dot_general(x, a_im, dn, preferred_element_type=jnp.float32)


def _complex_mv(x_stack, a_packed, *, tn, tk, adjoint):
    """Returns (P, Q) float32 of shape (2B, n_dim)."""
    two_b, k_dim = x_stack.shape
    _, ktr_pad, v_pad = a_packed.shape

    if adjoint:
        assert k_dim == ktr_pad
        n_dim = v_pad
        a_block = (2, tk, tn)
        a_index = lambda j, k: (0, k, j)
    else:
        assert k_dim == v_pad
        n_dim = ktr_pad
        a_block = (2, tn, tk)
        a_index = lambda j, k: (0, j, k)
    assert n_dim % tn == 0 and k_dim % tk == 0

    grid = (n_dim // tn, k_dim // tk)          # reduction axis last

    grid_spec = pltpu.PrefetchScalarGridSpec(
        num_scalar_prefetch=0,
        grid=grid,
        in_specs=[
            pl.BlockSpec((two_b, tk), lambda j, k: (0, k)),   # contiguous x rows
            pl.BlockSpec(a_block, a_index),                   # fused re+im A tile
        ],
        out_specs=[
            pl.BlockSpec((two_b, tn), lambda j, k: (0, j)),   # resident f32 acc
            pl.BlockSpec((two_b, tn), lambda j, k: (0, j)),
        ],
    )

    a_bytes = 2 * ktr_pad * v_pad * 2                      # A streamed once
    x_bytes = grid[0] * two_b * k_dim * 2                  # x re-streamed per j
    out_bytes = 2 * two_b * n_dim * 4
    cost = pl.CostEstimate(
        flops=int(2 * 2 * two_b * n_dim * k_dim),          # 2 real matmuls
        transcendentals=0,
        bytes_accessed=int(a_bytes + x_bytes + out_bytes),
    )

    out_shape = (jax.ShapeDtypeStruct((two_b, n_dim), jnp.float32),
                 jax.ShapeDtypeStruct((two_b, n_dim), jnp.float32))
    return pl.pallas_call(
        functools.partial(_mv_kernel, adjoint=adjoint),
        out_shape=out_shape,
        grid_spec=grid_spec,
        compiler_params=pltpu.CompilerParams(
            dimension_semantics=("parallel", "arbitrary"),
            vmem_limit_bytes=48 * 1024 * 1024,   # safe on v7x (64 MiB physical)
        ),
        cost_estimate=cost,
    )(x_stack, a_packed)


# ----------------------------------------------------------------------------
# Forward matrix A (scattering kernel), computed once (glue, chunked over K so
# the full f32 phase tensor is never materialized).
# A[k,t,r,xyz] = exp(-1j*k*(R_rx + R_tx)) / (R_rx * R_tx * 4*pi)
# ----------------------------------------------------------------------------
def compute_A_bf16(ks, tx_positions, rx_positions, x_coords, y_coords, z_coords):
    X, Y, Z = jnp.meshgrid(x_coords, y_coords, z_coords, indexing="ij")
    coords = jnp.stack([X, Y, Z], axis=-1).reshape(-1, 3).astype(jnp.float32)  # (V,3)

    def dist(pos):                                     # (P,3) -> (P,V)
        d = coords[None, :, :] - jnp.asarray(pos, jnp.float32)[:, None, :]
        return jnp.sqrt(jnp.sum(d * d, axis=-1))

    R_tx = dist(tx_positions)                          # (T,V)
    R_rx = dist(rx_positions)                          # (R,V)
    R_sum = R_tx[:, None, :] + R_rx[None, :, :]        # (T,R,V)
    amp = 1.0 / (R_tx[:, None, :] * R_rx[None, :, :] * 4.0 * jnp.pi)

    def one_k(k):
        phase = -k * R_sum
        return ((jnp.cos(phase) * amp).astype(jnp.bfloat16),
                (jnp.sin(phase) * amp).astype(jnp.bfloat16))

    A_re, A_im = lax.map(one_k, jnp.asarray(ks, jnp.float32))   # (K,T,R,V) bf16
    K, T, R, V = A_re.shape
    return A_re.reshape(K * T * R, V), A_im.reshape(K * T * R, V)


# ----------------------------------------------------------------------------
# MVProd equivalent.
# ----------------------------------------------------------------------------
class MVProdPallas:
    KTR_TILE_TARGET = 1024
    V_TILE_TARGET = 2048

    def __init__(self, freqs, tx_positions, rx_positions, x_coords, y_coords,
                 z_coords):
        self.ks = 2.0 * jnp.pi * jnp.asarray(freqs, jnp.float32) / C_SOL
        self.shape_ktr = (int(freqs.shape[0]), int(tx_positions.shape[0]),
                          int(rx_positions.shape[0]))
        self.shape_xyz = (int(x_coords.shape[0]), int(y_coords.shape[0]),
                          int(z_coords.shape[0]))
        self.KTR = math.prod(self.shape_ktr)
        self.V = math.prod(self.shape_xyz)

        self.t_ktr, self.KTR_pad = _pick_tiling(self.KTR, self.KTR_TILE_TARGET)
        self.t_v, self.V_pad = _pick_tiling(self.V, self.V_TILE_TARGET)

        A_re, A_im = compute_A_bf16(self.ks, tx_positions, rx_positions,
                                    x_coords, y_coords, z_coords)
        pad = ((0, self.KTR_pad - self.KTR), (0, self.V_pad - self.V))
        # Single fused bf16 copy of A: (2, KTR_pad, V_pad), [0]=re, [1]=im.
        self.A = jnp.stack([jnp.pad(A_re, pad), jnp.pad(A_im, pad)], axis=0)

    @staticmethod
    def _split(x):
        x = jnp.asarray(x)
        if jnp.iscomplexobj(x):
            return (jnp.real(x).astype(jnp.float32),
                    jnp.imag(x).astype(jnp.float32))
        xr = x.astype(jnp.float32)
        return xr, jnp.zeros_like(xr)

    def __call__(self, input_signal, adjoint=False):
        xr, xi = self._split(input_signal)
        lead = xr.shape[:-3]
        B = math.prod(lead) if lead else 1

        if not adjoint:
            dim, dim_pad = self.V, self.V_pad
            out_dim, out_tail = self.KTR, self.shape_ktr
            tn, tk = self.t_ktr, self.t_v
        else:
            dim, dim_pad = self.KTR, self.KTR_pad
            out_dim, out_tail = self.V, self.shape_xyz
            tn, tk = self.t_v, self.t_ktr

        pad = ((0, 0), (0, dim_pad - dim))
        # Contiguous (2B, dim_pad) rows: [0:B]=real, [B:2B]=imag.
        x_stack = jnp.concatenate(
            [jnp.pad(xr.reshape(B, dim), pad),
             jnp.pad(xi.reshape(B, dim), pad)], axis=0).astype(jnp.bfloat16)

        p, q = _complex_mv(x_stack, self.A, tn=tn, tk=tk, adjoint=adjoint)

        pr, pi = p[:B], p[B:]
        qr, qi = q[:B], q[B:]
        if adjoint:          # y = meas @ conj(A)
            y_re = pr + qi
            y_im = pi - qr
        else:                # y = scene @ A^T   (== einsum('ktrv,Bv->Bktr'))
            y_re = pr - qi
            y_im = pi + qr

        out = (y_re[:, :out_dim] + 1j * y_im[:, :out_dim]).astype(jnp.complex64)
        return out.reshape(lead + out_tail)


# ----------------------------------------------------------------------------
if __name__ == "__main__":
    key = jax.random.PRNGKey(0)

    # Small synthetic planar-array radar config (deterministic).
    n_freq, n_tx, n_rx = 2, 2, 2
    nx = ny = nz = 8
    freqs = jnp.linspace(75e9, 80e9, n_freq)
    tx_positions = jnp.array([[-0.05, -0.02, 0.0],
                              [0.05, 0.02, 0.0]], dtype=jnp.float32)
    rx_positions = jnp.array([[-0.04, 0.03, 0.0],
                              [0.04, -0.03, 0.0]], dtype=jnp.float32)
    x_coords = jnp.linspace(-0.1, 0.1, nx)
    y_coords = jnp.linspace(-0.1, 0.1, ny)
    z_coords = jnp.linspace(0.3, 0.5, nz)

    model = MVProdPallas(freqs, tx_positions, rx_positions,
                         x_coords, y_coords, z_coords)

    # Scene: (N, x, y, z) real reflectivities.
    scene = jax.random.normal(key, (2, nx, ny, nz), dtype=jnp.float32)

    # Forward (Born measurement) and adjoint via the Pallas kernel.
    meas = jax.block_until_ready(model(scene, adjoint=False))
    back = jax.block_until_ready(model(meas, adjoint=True))

    # Reference: plain complex64 einsum with identically bf16-quantized A and
    # inputs (so only accumulation order/precision differs).
    A_re_f = model.A[0, : model.KTR, : model.V].astype(jnp.float32)
    A_im_f = model.A[1, : model.KTR, : model.V].astype(jnp.float32)
    A_full = (A_re_f + 1j * A_im_f).astype(jnp.complex64).reshape(
        model.shape_ktr + model.shape_xyz)

    def _quant(z):
        z = jnp.asarray(z)
        zr = jnp.real(z).astype(jnp.bfloat16).astype(jnp.float32)
        zi = jnp.imag(z).astype(jnp.bfloat16).astype(jnp.float32)
        return (zr + 1j * zi).astype(jnp.complex64)

    hp = lax.Precision.HIGHEST
    meas_ref = jnp.einsum("ktrxyz,Nxyz->Nktr", A_full, _quant(scene), precision=hp)
    back_ref = jnp.einsum("ktrxyz,Nktr->Nxyz", jnp.conj(A_full), _quant(meas),
                          precision=hp)

    assert meas.shape == (2, n_freq, n_tx, n_rx)
    assert back.shape == (2, nx, ny, nz)
    assert jnp.allclose(meas, meas_ref, rtol=1e-2, atol=1e-2)
    assert jnp.allclose(back, back_ref, rtol=1e-2, atol=1e-2)

    print("KERNEL_OK")
</pallas_src>

<mosaic_0001>
module attributes {stable_mosaic.version = 11 : i64} {
  func.func @_mv_kernel(%arg0: i32, %arg1: i32, %arg2: memref<4x256xbf16, #tpu.memory_space<vmem>>, %arg3: memref<2x128x256xbf16, #tpu.memory_space<vmem>>, %arg4: memref<4x128xf32, #tpu.memory_space<vmem>>, %arg5: memref<4x128xf32, #tpu.memory_space<vmem>>) attributes {dimension_semantics = [#tpu.dimension_semantics<parallel>, #tpu.dimension_semantics<arbitrary>], iteration_bounds = array<i64: 1, 2>, scalar_prefetch = 0 : i64, scratch_operands = 0 : i64, tpu.core_type = #tpu.core_type<tc>, window_params = [{transform_indices = @transform_0, window_bounds = array<i64: 4, 256>}, {transform_indices = @transform_1, window_bounds = array<i64: 2, 128, 256>}, {transform_indices = @transform_2, window_bounds = array<i64: 4, 128>}, {transform_indices = @transform_3, window_bounds = array<i64: 4, 128>}]} {
    %c0_i32 = arith.constant 0 : i32
    %0 = arith.cmpi eq, %arg1, %c0_i32 : i32
    %1 = arith.extui %0 : i1 to i32
    %c0_i32_0 = arith.constant 0 : i32
    %2 = arith.cmpi ne, %1, %c0_i32_0 : i32
    scf.if %2 {
      %cst_16 = arith.constant 0.000000e+00 : f32
      %16 = vector.broadcast %cst_16 : f32 to vector<4x128xf32>
      %c0_17 = arith.constant 0 : index
      %c0_18 = arith.constant 0 : index
      %17 = vector.load %arg4[%c0_17, %c0_18] : memref<4x128xf32, #tpu.memory_space<vmem>>, vector<4x128xf32>
      tpu.vector_store %arg4[%c0_17, %c0_18], %16 {strides = array<i32>} : memref<4x128xf32, #tpu.memory_space<vmem>>, vector<4x128xf32>,
      %cst_19 = arith.constant 0.000000e+00 : f32
      %18 = vector.broadcast %cst_19 : f32 to vector<4x128xf32>
      %c0_20 = arith.constant 0 : index
      %c0_21 = arith.constant 0 : index
      %19 = vector.load %arg5[%c0_20, %c0_21] : memref<4x128xf32, #tpu.memory_space<vmem>>, vector<4x128xf32>
      tpu.vector_store %arg5[%c0_20, %c0_21], %18 {strides = array<i32>} : memref<4x128xf32, #tpu.memory_space<vmem>>, vector<4x128xf32>,
    } else {
    }
    %c0 = arith.constant 0 : index
    %c0_1 = arith.constant 0 : index
    %3 = vector.load %arg2[%c0, %c0_1] : memref<4x256xbf16, #tpu.memory_space<vmem>>, vector<4x256xbf16>
    %c0_2 = arith.constant 0 : index
    %c0_3 = arith.constant 0 : index
    %c0_4 = arith.constant 0 : index
    %4 = vector.load %arg3[%c0_2, %c0_3, %c0_4] : memref<2x128x256xbf16, #tpu.memory_space<vmem>>, vector<1x128x256xbf16>
    %5 = vector.shape_cast %4 : vector<1x128x256xbf16> to vector<128x256xbf16>
    %c1 = arith.constant 1 : index
    %c0_5 = arith.constant 0 : index
    %c0_6 = arith.constant 0 : index
    %6 = vector.load %arg3[%c1, %c0_5, %c0_6] : memref<2x128x256xbf16, #tpu.memory_space<vmem>>, vector<1x128x256xbf16>
    %7 = vector.shape_cast %6 : vector<1x128x256xbf16> to vector<128x256xbf16>
    %c0_7 = arith.constant 0 : index
    %c0_8 = arith.constant 0 : index
    %8 = vector.load %arg4[%c0_7, %c0_8] : memref<4x128xf32, #tpu.memory_space<vmem>>, vector<4x128xf32>
    %cst = arith.constant dense<0.000000e+00> : vector<4x128xf32>
    %9 = tpu.matmul %3, %5, %cst {dimension_numbers = #tpu.dot_dimension_numbers<[1], [1], [0], [0], [0, 0, 1, 0], [], []>} : vector<4x256xbf16>, vector<128x256xbf16>, vector<4x128xf32> -> vector<4x128xf32>
    %10 = arith.addf %8, %9 : vector<4x128xf32>
    %c0_9 = arith.constant 0 : index
    %c0_10 = arith.constant 0 : index
    %11 = vector.load %arg4[%c0_9, %c0_10] : memref<4x128xf32, #tpu.memory_space<vmem>>, vector<4x128xf32>
    tpu.vector_store %arg4[%c0_9, %c0_10], %10 {strides = array<i32>} : memref<4x128xf32, #tpu.memory_space<vmem>>, vector<4x128xf32>,
    %c0_11 = arith.constant 0 : index
    %c0_12 = arith.constant 0 : index
    %12 = vector.load %arg5[%c0_11, %c0_12] : memref<4x128xf32, #tpu.memory_space<vmem>>, vector<4x128xf32>
    %cst_13 = arith.constant dense<0.000000e+00> : vector<4x128xf32>
    %13 = tpu.matmul %3, %7, %cst_13 {dimension_numbers = #tpu.dot_dimension_numbers<[1], [1], [0], [0], [0, 0, 1, 0], [], []>} : vector<4x256xbf16>, vector<128x256xbf16>, vector<4x128xf32> -> vector<4x128xf32>
    %14 = arith.addf %12, %13 : vector<4x128xf32>
    %c0_14 = arith.constant 0 : index
    %c0_15 = arith.constant 0 : index
    %15 = vector.load %arg5[%c0_14, %c0_15] : memref<4x128xf32, #tpu.memory_space<vmem>>, vector<4x128xf32>
    tpu.vector_store %arg5[%c0_14, %c0_15], %14 {strides = array<i32>} : memref<4x128xf32, #tpu.memory_space<vmem>>, vector<4x128xf32>,
    return
  }
  func.func @transform_0(%arg0: i32, %arg1: i32) -> (i32, i32) {
    %c0_i32 = arith.constant 0 : i32
    %c0_i32_0 = arith.constant 0 : i32
    return %c0_i32, %arg1 : i32, i32
  }
  func.func @transform_1(%arg0: i32, %arg1: i32) -> (i32, i32, i32) {
    %c0_i32 = arith.constant 0 : i32
    %c0_i32_0 = arith.constant 0 : i32
    return %c0_i32, %arg0, %arg1 : i32, i32, i32
  }
  func.func @transform_2(%arg0: i32, %arg1: i32) -> (i32, i32) {
    %c0_i32 = arith.constant 0 : i32
    %c0_i32_0 = arith.constant 0 : i32
    return %c0_i32, %arg0 : i32, i32
  }
  func.func @transform_3(%arg0: i32, %arg1: i32) -> (i32, i32) {
    %c0_i32 = arith.constant 0 : i32
    %c0_i32_0 = arith.constant 0 : i32
    return %c0_i32, %arg0 : i32, i32
  }
}

</mosaic_0001>

<llo_original>
// kernel: tpu_custom_call.1
$region0: #{tpu_custom_call.1}
  #allocation0 [shape = 'u32[]', space=smem, size = 0x4, offset = 0x4, fixed_abs, tag = 'smem constant byte address 0x4 - core index']
  #allocation1 [shape = 'u32[72,128]{1,0:T(1,128)}', space=vmem, size = 0x9000, scoped, tag = 'internal scratch']
  %s0 = inlined_call_operand.hbm [shape: bf16[4,512], index: 0, kind: input, shape index: {}]
  %s1 = inlined_call_operand.hbm [shape: bf16[2,128,512], index: 1, kind: input, shape index: {}]
  %s2 = inlined_call_operand.hbm [shape: f32[4,128], index: 2, kind: output, shape index: {0}]
  %s3 = inlined_call_operand.hbm [shape: f32[4,128], index: 3, kind: output, shape index: {1}]
  %4 = xla_tuple %s2, %s3
  %s5 = sld [smem:[#allocation0]]
  $region61: #{tpu_custom_call.1} parent=0
    _
  %s7 = ssub.s32 1, %s5
  %s8 = scalar_select 0, %s7, %s5
  $region1: #{tpu_custom_call.1} parent=0
    #allocation2 [shape = 'u8[4096]{0}', space=vmem, size = 0x1000, scoped, tag = 'input window, operand 0']
    #allocation3 [shape = 's32[2]{0}', space=sflag, size = 0x8, scoped, tag = 'scoped memory for tpu_custom_call.1']
    #allocation4 [shape = 's32[2]{0}', space=sflag, size = 0x8, scoped, tag = 'scoped memory for tpu_custom_call.1']
    #allocation5 [shape = 'u8[262144]{0}', space=vmem, size = 0x40000, scoped, tag = 'input window, operand 1']
    #allocation6 [shape = 's32[2]{0}', space=sflag, size = 0x8, scoped, tag = 'scoped memory for tpu_custom_call.1']
    #allocation7 [shape = 'u8[2048]{0}', space=vmem, size = 0x800, scoped, tag = 'output window, operand 0, single buffered']
    #allocation8 [shape = 'u8[2048]{0}', space=vmem, size = 0x800, scoped, tag = 'output window, operand 1, single buffered']
    #allocation9 [shape = 's32[1]{0}', space=sflag, size = 0x4, scoped, tag = 'scoped memory for tpu_custom_call.1']
    %9 = vsyncpa [#allocation3], 0
    %s10 = scalar_lea.sflag [#allocation3], 1
    %11 = vsyncpa %s10, 0
    %12 = vsyncpa [#allocation6], 0
    %s13 = scalar_lea.sflag [#allocation6], 1
    %14 = vsyncpa %s13, 0
    %15 = vsyncpa [#allocation4], 0
    %16 = vsyncpa [#allocation9], 0
    loop: start=0, step=1, limit=4
    $region2: #{tpu_custom_call.1} parent=1 // loop_pre_header
      _
    $region3: #{tpu_custom_call.1} parent=1 // loop_header
      %s18 = sphi 0, %s22
      %p19 = scmp.ge.s32.totalorder %s18, 4
      %s25 = sphi 0, %s37
      %s26 = sphi 0, %s33
      %s27 = sphi 0, %s25
      %s28 = sphi 0, %s26
      %s29 = sphi 0, %s27
      %s30 = sphi 0, %s28
      %s40 = sphi 0, %s42
      %s43 = sphi 0, %s40
      %s44 = sphi 0, %s43
      %s60 = sphi 0, %s44
      %s68 = sphi 0, %s70
      %s71 = sphi 0, %s68
      %s72 = sphi 0, %s71
      %s88 = sphi 0, %s72
      %s94 = sphi 0, %s96
      %s97 = sphi 0, %s94
      %s98 = sphi 0, %s97
      %s114 = sphi 0, %s98
      %s120 = sphi 0, %s122
      %s123 = sphi 0, %s120
      %s124 = sphi 0, %s123
      %s140 = sphi 0, %s124
    $region4: #{tpu_custom_call.1} parent=1 // loop_header_branch
      %21 = sbr.rel (%p19) target = $region8
    $region5: #{tpu_custom_call.1} parent=1 // loop_body
      %s23 = ssub.s32 %s18, 1
      %s24 = ssub.s32 %s18, 2
      %s31 = sadd.s32 1, %s26
      %p32 = scmp.ge.s32.totalorder %s31, 2
      %s33 = scalar_select %p32, 0, %s31
      %s34 = sadd.s32 1, %s25
      %s35 = scalar_select %p32, %s34, %s25
      %p36 = scmp.ge.s32.totalorder %s35, 1
      %s37 = scalar_select %p36, 0, %s35
      %s38 = ssub.s32 %s26, %s33
      %p39 = scmp.eq.s32.totalorder %s38, 0
      %s41 = sadd.s32 %s40, 1
      %s42 = scalar_select %p39, %s40, %s41
      %p45 = pneg %p39
      %p46 = scmp.eq.s32.totalorder %s18, 1
      %p47 = por %p45, %p46
      %p48 = scmp.ne.s32.totalorder %s40, %s43
      %p49 = scmp.eq.s32.totalorder %s18, 0
      %p50 = por %p48, %p49
      %p51 = scmp.ne.s32.totalorder %s40, %s43
      %p52 = scmp.eq.s32.totalorder %s23, 1
      %p53 = por %p51, %p52
      %p54 = scmp.ne.s32.totalorder %s43, %s44
      %p55 = scmp.eq.s32.totalorder %s23, 0
      %p56 = por %p54, %p55
      %p57 = scmp.ne.s32.totalorder %s43, %s44
      %p58 = scmp.eq.s32.totalorder %s24, 1
      %p59 = por %p57, %p58
      %p61 = scmp.ne.s32.totalorder %s44, %s60
      %p62 = scmp.eq.s32.totalorder %s24, 0
      %p63 = por %p61, %p62
      %s64 = ssub.s32 %s25, %s37
      %s65 = ssub.s32 %s26, %s33
      %s66 = sor.u32 %s64, %s65
      %p67 = scmp.eq.s32.totalorder %s66, 0
      %s69 = sadd.s32 %s68, 1
      %s70 = scalar_select %p67, %s68, %s69
      %p73 = pneg %p67
      %p74 = scmp.eq.s32.totalorder %s18, 1
      %p75 = por %p73, %p74
      %p76 = scmp.ne.s32.totalorder %s68, %s71
      %p77 = scmp.eq.s32.totalorder %s18, 0
      %p78 = por %p76, %p77
      %p79 = scmp.ne.s32.totalorder %s68, %s71
      %p80 = scmp.eq.s32.totalorder %s23, 1
      %p81 = por %p79, %p80
      %p82 = scmp.ne.s32.totalorder %s71, %s72
      %p83 = scmp.eq.s32.totalorder %s23, 0
      %p84 = por %p82, %p83
      %p85 = scmp.ne.s32.totalorder %s71, %s72
      %p86 = scmp.eq.s32.totalorder %s24, 1
      %p87 = por %p85, %p86
      %p89 = scmp.ne.s32.totalorder %s72, %s88
      %p90 = scmp.eq.s32.totalorder %s24, 0
      %p91 = por %p89, %p90
      %s92 = ssub.s32 %s25, %s37
      %p93 = scmp.eq.s32.totalorder %s92, 0
      %s95 = sadd.s32 %s94, 1
      %s96 = scalar_select %p93, %s94, %s95
      %p99 = pneg %p93
      %p100 = scmp.eq.s32.totalorder %s18, 1
      %p101 = por %p99, %p100
      %p102 = scmp.ne.s32.totalorder %s94, %s97
      %p103 = scmp.eq.s32.totalorder %s18, 0
      %p104 = por %p102, %p103
      %p105 = scmp.ne.s32.totalorder %s94, %s97
      %p106 = scmp.eq.s32.totalorder %s23, 1
      %p107 = por %p105, %p106
      %p108 = scmp.ne.s32.totalorder %s97, %s98
      %p109 = scmp.eq.s32.totalorder %s23, 0
      %p110 = por %p108, %p109
      %p111 = scmp.ne.s32.totalorder %s97, %s98
      %p112 = scmp.eq.s32.totalorder %s24, 1
      %p113 = por %p111, %p112
      %p115 = scmp.ne.s32.totalorder %s98, %s114
      %p116 = scmp.eq.s32.totalorder %s24, 0
      %p117 = por %p115, %p116
      %s118 = ssub.s32 %s25, %s37
      %p119 = scmp.eq.s32.totalorder %s118, 0
      %s121 = sadd.s32 %s120, 1
      %s122 = scalar_select %p119, %s120, %s121
      %p125 = pneg %p119
      %p126 = scmp.eq.s32.totalorder %s18, 1
      %p127 = por %p125, %p126
      %p128 = scmp.ne.s32.totalorder %s120, %s123
      %p129 = scmp.eq.s32.totalorder %s18, 0
      %p130 = por %p128, %p129
      %p131 = scmp.ne.s32.totalorder %s120, %s123
      %p132 = scmp.eq.s32.totalorder %s23, 1
      %p133 = por %p131, %p132
      %p134 = scmp.ne.s32.totalorder %s123, %s124
      %p135 = scmp.eq.s32.totalorder %s23, 0
      %p136 = por %p134, %p135
      %p137 = scmp.ne.s32.totalorder %s123, %s124
      %p138 = scmp.eq.s32.totalorder %s24, 1
      %p139 = por %p137, %p138
      %p141 = scmp.ne.s32.totalorder %s124, %s140
      %p142 = scmp.eq.s32.totalorder %s24, 0
      %p143 = por %p141, %p142
      %p144 = scmp.le.s32.totalorder 1, %s18
      %p145 = scmp.lt.s32.totalorder %s18, 3
      %p146 = pnand %p144, %p145
      %p147 = pneg %p146
      // Predicated region
      $region9: #{tpu_custom_call.1} parent=5 // pred_check
        _
      $region10: #{tpu_custom_call.1} parent=5 // pred_check_branch
        %149 = sbr.rel (%p146) target = $region12
      $region11: #{tpu_custom_call.1} parent=5 // pred_region
        %s150 = ssub.s32 %s18, 1
      $region12: #{tpu_custom_call.1} parent=5 // pred_fallthru
        _
      %p151 = scmp.lt.s32.totalorder %s18, 2
      // Predicated region
      $region13: #{tpu_custom_call.1} parent=5 // pred_check
        %p152 = pneg %p151
      $region14: #{tpu_custom_call.1} parent=5 // pred_check_branch
        %154 = sbr.rel (%p152) target = $region16
      $region15: #{tpu_custom_call.1} parent=5 // pred_region
        // Predicated region
        $region17: #{tpu_custom_call.1} parent=15 // pred_check
          %p155 = pneg %p50
        $region18: #{tpu_custom_call.1} parent=15 // pred_check_branch
          %157 = sbr.rel (%p155) target = $region20
        $region19: #{tpu_custom_call.1} parent=15 // pred_region
          %s158 = sand.u32 %s40, 1
          %s159 = scalar_lea.sflag [#allocation3], %s158
          %s160 = sand.u32 %s40, 1
          %s161 = smul.addr %s160, 4
          %s162 = scalar_lea.vmem [#allocation2], %s161
          %s163 = smul.u32 2, %s26
          %165 = vsyncadd %s159, 0
          %s166 = smul.addr %s163, 2
          %s167 = scalar_lea.hbm %s0, %s166
          %s169 = sshll.u32 %s167, 4
          %s170 = int_to_ptr.hbm [resolvable:$true] %s169
          %s171 = sshll.u32 %s162, 4
          %s172 = int_to_ptr.vmem [resolvable:$true] %s171
          %174 = dma.hbm_to_vmem [thread:$0]  %s170, 64, %s172, %s159
        $region20: #{tpu_custom_call.1} parent=15 // pred_fallthru
          _
        // Predicated region
        $region21: #{tpu_custom_call.1} parent=15 // pred_check
          %p175 = pneg %p78
        $region22: #{tpu_custom_call.1} parent=15 // pred_check_branch
          %177 = sbr.rel (%p175) target = $region24
        $region23: #{tpu_custom_call.1} parent=15 // pred_region
          %s178 = sand.u32 %s68, 1
          %s179 = scalar_lea.sflag [#allocation6], %s178
          %s180 = sand.u32 %s68, 1
          %s181 = smul.addr %s180, 256
          %s182 = scalar_lea.vmem [#allocation5], %s181
          %s183 = smul.u32 16, %s25
          %s184 = smul.u32 2, %s26
          %186 = vsyncadd %s179, 0
          %s187 = smul.addr %s183, 4
          %s188 = sadd.s32 %s184, %s187
          %s189 = smul.addr %s188, 4
          %s190 = scalar_lea.hbm %s1, %s189
          %s191 = sshll.u32 %s190, 4
          %s192 = int_to_ptr.hbm [resolvable:$true] %s191
          %s193 = sshll.u32 %s182, 4
          %s194 = int_to_ptr.vmem [resolvable:$true] %s193
          %199 = dma.hbm_to_vmem [thread:$0]  %s192, 4096, %s194, %s179, 256, 128, 8
        $region24: #{tpu_custom_call.1} parent=15 // pred_fallthru
          _
      $region16: #{tpu_custom_call.1} parent=5 // pred_fallthru
        _
      %p200 = scmp.le.s32.totalorder 1, %s18
      %p201 = scmp.lt.s32.totalorder %s18, 3
      %p202 = pnand %p200, %p201
      %p203 = pneg %p202
      // Predicated region
      $region25: #{tpu_custom_call.1} parent=5 // pred_check
        _
      $region26: #{tpu_custom_call.1} parent=5 // pred_check_branch
        %205 = sbr.rel (%p202) target = $region28
      $region27: #{tpu_custom_call.1} parent=5 // pred_region
        %s206 = ssub.s32 %s18, 1
        %s207 = sand.u32 %s43, 1
        %s208 = scalar_lea.sflag [#allocation3], %s207
        %s209 = sand.u32 %s43, 1
        %s210 = smul.addr %s209, 4
        %s211 = scalar_lea.vmem [#allocation2], %s210
        // Predicated region
        $region29: #{tpu_custom_call.1} parent=27 // pred_check
          %p212 = pneg %p56
        $region30: #{tpu_custom_call.1} parent=27 // pred_check_branch
          %214 = sbr.rel (%p212) target = $region32
        $region31: #{tpu_custom_call.1} parent=27 // pred_region
          %216 = dma.done %s208, 64
        $region32: #{tpu_custom_call.1} parent=27 // pred_fallthru
          _
        %s217 = sand.u32 %s71, 1
        %s218 = scalar_lea.sflag [#allocation6], %s217
        %s219 = sand.u32 %s71, 1
        %s220 = smul.addr %s219, 256
        %s221 = scalar_lea.vmem [#allocation5], %s220
        // Predicated region
        $region33: #{tpu_custom_call.1} parent=27 // pred_check
          %p222 = pneg %p84
        $region34: #{tpu_custom_call.1} parent=27 // pred_check_branch
          %224 = sbr.rel (%p222) target = $region36
        $region35: #{tpu_custom_call.1} parent=27 // pred_region
          %226 = dma.done %s218, 4096
        $region36: #{tpu_custom_call.1} parent=27 // pred_fallthru
          _
        %s227 = sand.u32 %s43, 1
        %s228 = scalar_lea.sflag [#allocation3], %s227
        %s229 = sand.u32 %s43, 1
        %s230 = smul.addr %s229, 4
        %s231 = scalar_lea.vmem [#allocation2], %s230
        %p232 = pneg %p56
        %p233 = pneg %p53
        %s234 = sand.u32 %s71, 1
        %s235 = scalar_lea.sflag [#allocation6], %s234
        %s236 = sand.u32 %s71, 1
        %s237 = smul.addr %s236, 256
        %s238 = scalar_lea.vmem [#allocation5], %s237
        %p239 = pneg %p84
        %p240 = pneg %p81
        %p241 = pneg %p110
        %p242 = pneg %p107
        %p243 = pneg %p136
        %p244 = pneg %p133
        %s245 = smul.u32 2, %s28
        %s246 = smul.u32 16, %s27
        %s247 = smul.u32 2, %s28
        %p248 = scmp.eq.s32.totalorder %s28, 0
        // Predicated region
        $region37: #{tpu_custom_call.1} parent=27 // pred_check
          %p249 = pneg %p248
        $region38: #{tpu_custom_call.1} parent=27 // pred_check_branch
          %251 = sbr.rel (%p249) target = $region40
        $region39: #{tpu_custom_call.1} parent=27 // pred_region
          %252 = vst [vmem:[#allocation7] sm:$0xf] 0.0
          %253 = vst [vmem:[#allocation8] sm:$0xf] 0.0
        $region40: #{tpu_custom_call.1} parent=27 // pred_fallthru
          _
        %v254 = vld [vmem:[%s211] sm:$0xf]
        %v255 = vld [vmem:[%s221] sm:$0xff]
        %v256 = vld [vmem:[%s221 + $0x8] sm:$0xff]
        %v257 = vld [vmem:[%s221 + $0x10] sm:$0xff]
        %v258 = vld [vmem:[%s221 + $0x18] sm:$0xff]
        %v259 = vld [vmem:[%s221 + $0x20] sm:$0xff]
        %v260 = vld [vmem:[%s221 + $0x28] sm:$0xff]
        %v261 = vld [vmem:[%s221 + $0x30] sm:$0xff]
        %v262 = vld [vmem:[%s221 + $0x38] sm:$0xff]
        %v263 = vld [vmem:[%s221 + $0x40] sm:$0xff]
        %v264 = vld [vmem:[%s221 + $0x48] sm:$0xff]
        %v265 = vld [vmem:[%s221 + $0x50] sm:$0xff]
        %v266 = vld [vmem:[%s221 + $0x58] sm:$0xff]
        %v267 = vld [vmem:[%s221 + $0x60] sm:$0xff]
        %v268 = vld [vmem:[%s221 + $0x68] sm:$0xff]
        %v269 = vld [vmem:[%s221 + $0x70] sm:$0xff]
        %v270 = vld [vmem:[%s221 + $0x78] sm:$0xff]
        %s271 = scalar_lea.vmem %s221, 128 [#allocation5]
        %v272 = vld [vmem:[%s271] sm:$0xff]
        %v273 = vld [vmem:[%s271 + $0x8] sm:$0xff]
        %v274 = vld [vmem:[%s271 + $0x10] sm:$0xff]
        %v275 = vld [vmem:[%s271 + $0x18] sm:$0xff]
        %v276 = vld [vmem:[%s271 + $0x20] sm:$0xff]
        %v277 = vld [vmem:[%s271 + $0x28] sm:$0xff]
        %v278 = vld [vmem:[%s271 + $0x30] sm:$0xff]
        %v279 = vld [vmem:[%s271 + $0x38] sm:$0xff]
        %v280 = vld [vmem:[%s271 + $0x40] sm:$0xff]
        %v281 = vld [vmem:[%s271 + $0x48] sm:$0xff]
        %v282 = vld [vmem:[%s271 + $0x50] sm:$0xff]
        %v283 = vld [vmem:[%s271 + $0x58] sm:$0xff]
        %v284 = vld [vmem:[%s271 + $0x60] sm:$0xff]
        %v285 = vld [vmem:[%s271 + $0x68] sm:$0xff]
        %v286 = vld [vmem:[%s271 + $0x70] sm:$0xff]
        %v287 = vld [vmem:[%s271 + $0x78] sm:$0xff]
        %v288 = vld [vmem:[#allocation7] sm:$0xf]
        %290 = vst [vmem:[#allocation1] ss:$4 sm:$0xff] %v254
        %v291 = vld.sshfl [vmem:[#allocation1] sm:$0xff pattern:$0x73625140]
        %v292 = vld.sshfl [vmem:[#allocation1 + $0x8] sm:$0xff pattern:$0x73625140]
        %v311 = vunpack.c.l.b16 %v255
        %v312 = vunpack.c.h.b16 %v255
        %v313 = vunpack.c.l.b16 %v256
        %v314 = vunpack.c.h.b16 %v256
        %v315 = vunpack.c.l.b16 %v257
        %v316 = vunpack.c.h.b16 %v257
        %v317 = vunpack.c.l.b16 %v258
        %v318 = vunpack.c.h.b16 %v258
        %v319 = vunpack.c.l.b16 %v259
        %v320 = vunpack.c.h.b16 %v259
        %v321 = vunpack.c.l.b16 %v260
        %v322 = vunpack.c.h.b16 %v260
        %v323 = vunpack.c.l.b16 %v261
        %v324 = vunpack.c.h.b16 %v261
        %v325 = vunpack.c.l.b16 %v262
        %v326 = vunpack.c.h.b16 %v262
        %v327 = vunpack.c.l.b16 %v263
        %v328 = vunpack.c.h.b16 %v263
        %v329 = vunpack.c.l.b16 %v264
        %v330 = vunpack.c.h.b16 %v264
        %v331 = vunpack.c.l.b16 %v265
        %v332 = vunpack.c.h.b16 %v265
        %v333 = vunpack.c.l.b16 %v266
        %v334 = vunpack.c.h.b16 %v266
        %v335 = vunpack.c.l.b16 %v267
        %v336 = vunpack.c.h.b16 %v267
        %v337 = vunpack.c.l.b16 %v268
        %v338 = vunpack.c.h.b16 %v268
        %v339 = vunpack.c.l.b16 %v269
        %v340 = vunpack.c.h.b16 %v269
        %v341 = vunpack.c.l.b16 %v270
        %v342 = vunpack.c.h.b16 %v270
        %v343 = vpack.c.b16 %v313, %v311
        %v344 = vpack.c.b16 %v314, %v312
        %v345 = vpack.c.b16 %v317, %v315
        %v346 = vpack.c.b16 %v318, %v316
        %v347 = vpack.c.b16 %v321, %v319
        %v348 = vpack.c.b16 %v322, %v320
        %v349 = vpack.c.b16 %v325, %v323
        %v350 = vpack.c.b16 %v326, %v324
        %v351 = vpack.c.b16 %v329, %v327
        %v352 = vpack.c.b16 %v330, %v328
        %v353 = vpack.c.b16 %v333, %v331
        %v354 = vpack.c.b16 %v334, %v332
        %v355 = vpack.c.b16 %v337, %v335
        %v356 = vpack.c.b16 %v338, %v336
        %v357 = vpack.c.b16 %v341, %v339
        %v358 = vpack.c.b16 %v342, %v340
        %375 = vmatpush.bf16.xpose.msra.mxu0 %v357
        %376 = vmatpush.bf16.xpose.msra.mxu0 %v355
        %377 = vmatpush.bf16.xpose.msra.mxu0 %v353
        %378 = vmatpush.bf16.xpose.msra.mxu0 %v351
        %379 = vmatpush.bf16.xpose.msra.mxu0 %v349
        %380 = vmatpush.bf16.xpose.msra.mxu0 %v347
        %381 = vmatpush.bf16.xpose.msra.mxu0 %v345
        %382 = vmatpush.bf16.xpose.msra.mxu0 %v343
        %383 = vmatmul.bf16.gmra.mxu0 %v291
        %v384 = vpop.f32.mrf.mxu0
        %v385 = vadd.f32 0.0, %v384
        %v386 = vpop.f32.mrf.mxu0
        %387 = vdwg.mxu0
        %388 = vmatpush.bf16.xpose.msra.mxu0 %v358
        %389 = vmatpush.bf16.xpose.msra.mxu0 %v356
        %390 = vmatpush.bf16.xpose.msra.mxu0 %v354
        %391 = vmatpush.bf16.xpose.msra.mxu0 %v352
        %392 = vmatpush.bf16.xpose.msra.mxu0 %v350
        %393 = vmatpush.bf16.xpose.msra.mxu0 %v348
        %394 = vmatpush.bf16.xpose.msra.mxu0 %v346
        %395 = vmatpush.bf16.xpose.msra.mxu0 %v344
        %396 = vmatmul.bf16.gmra.mxu0 %v292
        %v397 = vpop.f32.mrf.mxu0
        %v398 = vadd.f32 %v385, %v397
        %v399 = vpop.f32.mrf.mxu0
        %400 = vdwg.mxu0
        %v401 = vadd.f32 %v288, %v398
        %402 = vst [vmem:[#allocation7] sm:$0xf] %v401
        %v403 = vld [vmem:[#allocation8] sm:$0xf]
        %404 = vst [vmem:[#allocation1] ss:$4 sm:$0xff] %v254
        %v405 = vld.sshfl [vmem:[#allocation1] sm:$0xff pattern:$0x73625140]
        %v406 = vld.sshfl [vmem:[#allocation1 + $0x8] sm:$0xff pattern:$0x73625140]
        %v425 = vunpack.c.l.b16 %v272
        %v426 = vunpack.c.h.b16 %v272
        %v427 = vunpack.c.l.b16 %v273
        %v428 = vunpack.c.h.b16 %v273
        %v429 = vunpack.c.l.b16 %v274
        %v430 = vunpack.c.h.b16 %v274
        %v431 = vunpack.c.l.b16 %v275
        %v432 = vunpack.c.h.b16 %v275
        %v433 = vunpack.c.l.b16 %v276
        %v434 = vunpack.c.h.b16 %v276
        %v435 = vunpack.c.l.b16 %v277
        %v436 = vunpack.c.h.b16 %v277
        %v437 = vunpack.c.l.b16 %v278
        %v438 = vunpack.c.h.b16 %v278
        %v439 = vunpack.c.l.b16 %v279
        %v440 = vunpack.c.h.b16 %v279
        %v441 = vunpack.c.l.b16 %v280
        %v442 = vunpack.c.h.b16 %v280
        %v443 = vunpack.c.l.b16 %v281
        %v444 = vunpack.c.h.b16 %v281
        %v445 = vunpack.c.l.b16 %v282
        %v446 = vunpack.c.h.b16 %v282
        %v447 = vunpack.c.l.b16 %v283
        %v448 = vunpack.c.h.b16 %v283
        %v449 = vunpack.c.l.b16 %v284
        %v450 = vunpack.c.h.b16 %v284
        %v451 = vunpack.c.l.b16 %v285
        %v452 = vunpack.c.h.b16 %v285
        %v453 = vunpack.c.l.b16 %v286
        %v454 = vunpack.c.h.b16 %v286
        %v455 = vunpack.c.l.b16 %v287
        %v456 = vunpack.c.h.b16 %v287
        %v457 = vpack.c.b16 %v427, %v425
        %v458 = vpack.c.b16 %v428, %v426
        %v459 = vpack.c.b16 %v431, %v429
        %v460 = vpack.c.b16 %v432, %v430
        %v461 = vpack.c.b16 %v435, %v433
        %v462 = vpack.c.b16 %v436, %v434
        %v463 = vpack.c.b16 %v439, %v437
        %v464 = vpack.c.b16 %v440, %v438
        %v465 = vpack.c.b16 %v443, %v441
        %v466 = vpack.c.b16 %v444, %v442
        %v467 = vpack.c.b16 %v447, %v445
        %v468 = vpack.c.b16 %v448, %v446
        %v469 = vpack.c.b16 %v451, %v449
        %v470 = vpack.c.b16 %v452, %v450
        %v471 = vpack.c.b16 %v455, %v453
        %v472 = vpack.c.b16 %v456, %v454
        %489 = vmatpush.bf16.xpose.msra.mxu0 %v471
        %490 = vmatpush.bf16.xpose.msra.mxu0 %v469
        %491 = vmatpush.bf16.xpose.msra.mxu0 %v467
        %492 = vmatpush.bf16.xpose.msra.mxu0 %v465
        %493 = vmatpush.bf16.xpose.msra.mxu0 %v463
        %494 = vmatpush.bf16.xpose.msra.mxu0 %v461
        %495 = vmatpush.bf16.xpose.msra.mxu0 %v459
        %496 = vmatpush.bf16.xpose.msra.mxu0 %v457
        %497 = vmatmul.bf16.gmra.mxu0 %v405
        %v498 = vpop.f32.mrf.mxu0
        %v499 = vadd.f32 0.0, %v498
        %v500 = vpop.f32.mrf.mxu0
        %501 = vdwg.mxu0
        %502 = vmatpush.bf16.xpose.msra.mxu0 %v472
        %503 = vmatpush.bf16.xpose.msra.mxu0 %v470
        %504 = vmatpush.bf16.xpose.msra.mxu0 %v468
        %505 = vmatpush.bf16.xpose.msra.mxu0 %v466
        %506 = vmatpush.bf16.xpose.msra.mxu0 %v464
        %507 = vmatpush.bf16.xpose.msra.mxu0 %v462
        %508 = vmatpush.bf16.xpose.msra.mxu0 %v460
        %509 = vmatpush.bf16.xpose.msra.mxu0 %v458
        %510 = vmatmul.bf16.gmra.mxu0 %v406
        %v511 = vpop.f32.mrf.mxu0
        %v512 = vadd.f32 %v499, %v511
        %v513 = vpop.f32.mrf.mxu0
        %514 = vdwg.mxu0
        %v515 = vadd.f32 %v403, %v512
        %516 = vst [vmem:[#allocation8] sm:$0xf] %v515
        // Predicated region
        $region41: #{tpu_custom_call.1} parent=27 // pred_check
          %p517 = pneg %p107
        $region42: #{tpu_custom_call.1} parent=27 // pred_check_branch
          %519 = sbr.rel (%p517) target = $region44
        $region43: #{tpu_custom_call.1} parent=27 // pred_region
          %521 = vsyncadd [#allocation4], 0
          %s522 = smul.addr %s27, 4
          %s523 = scalar_lea.hbm %s2, %s522
          %s525 = sshll.u32 [#allocation7], 4
          %s526 = int_to_ptr.vmem [resolvable:$true] %s525
          %s527 = sshll.u32 %s523, 4
          %s528 = int_to_ptr.hbm [resolvable:$true] %s527
          %530 = dma.vmem_to_hbm [thread:$0]  %s526, 64, %s528, [#allocation4]
        $region44: #{tpu_custom_call.1} parent=27 // pred_fallthru
          _
        // Predicated region
        $region45: #{tpu_custom_call.1} parent=27 // pred_check
          %p531 = pneg %p133
        $region46: #{tpu_custom_call.1} parent=27 // pred_check_branch
          %533 = sbr.rel (%p531) target = $region48
        $region47: #{tpu_custom_call.1} parent=27 // pred_region
          %535 = vsyncadd [#allocation9], 0
          %s536 = smul.addr %s27, 4
          %s537 = scalar_lea.hbm %s3, %s536
          %s539 = sshll.u32 [#allocation8], 4
          %s540 = int_to_ptr.vmem [resolvable:$true] %s539
          %s541 = sshll.u32 %s537, 4
          %s542 = int_to_ptr.hbm [resolvable:$true] %s541
          %544 = dma.vmem_to_hbm [thread:$0]  %s540, 64, %s542, [#allocation9]
        $region48: #{tpu_custom_call.1} parent=27 // pred_fallthru
          _
        // Predicated region
        $region49: #{tpu_custom_call.1} parent=27 // pred_check
          %p545 = pneg %p107
        $region50: #{tpu_custom_call.1} parent=27 // pred_check_branch
          %547 = sbr.rel (%p545) target = $region52
        $region51: #{tpu_custom_call.1} parent=27 // pred_region
          %549 = dma.done [#allocation4], 64
        $region52: #{tpu_custom_call.1} parent=27 // pred_fallthru
          _
        // Predicated region
        $region53: #{tpu_custom_call.1} parent=27 // pred_check
          %p550 = pneg %p133
        $region54: #{tpu_custom_call.1} parent=27 // pred_check_branch
          %552 = sbr.rel (%p550) target = $region56
        $region55: #{tpu_custom_call.1} parent=27 // pred_region
          %554 = dma.done [#allocation9], 64
        $region56: #{tpu_custom_call.1} parent=27 // pred_fallthru
          _
      $region28: #{tpu_custom_call.1} parent=5 // pred_fallthru
        _
      %p555 = scmp.le.s32.totalorder 2, %s18
      // Predicated region
      $region57: #{tpu_custom_call.1} parent=5 // pred_check
        %p556 = pneg %p555
      $region58: #{tpu_custom_call.1} parent=5 // pred_check_branch
        %558 = sbr.rel (%p556) target = $region60
      $region59: #{tpu_custom_call.1} parent=5 // pred_region
        %s559 = ssub.s32 %s18, 2
      $region60: #{tpu_custom_call.1} parent=5 // pred_fallthru
        _
    $region6: #{tpu_custom_call.1} parent=1 // loop_footer
      %s22 = sadd.s32 1, %s18
    $region7: #{tpu_custom_call.1} parent=1 // loop_footer_branch
      %17 = sbr.rel target = $region3
    $region8: #{tpu_custom_call.1} parent=1 // loop_exit
      _
    %560 = vsyncpa [#allocation3], 1
    %s561 = scalar_lea.sflag [#allocation3], 1
    %562 = vsyncpa %s561, 1
    %563 = vsyncpa [#allocation6], 1
    %s564 = scalar_lea.sflag [#allocation6], 1
    %565 = vsyncpa %s564, 1
    %566 = vsyncpa [#allocation4], 1
    %s567 = scalar_lea.sflag [#allocation4], 1
    %568 = vsyncpa %s567, 1
    %569 = vsyncpa [#allocation9], 1

</llo_original>
